<compile_context>
chip_gen: v6e
topology: v6e:2x2x1
jax: 0.10.0
libtpu: 0.0.40
codegen_flags: <defaults>
</compile_context>

<pallas_src>
import jax
import jax.numpy as jnp
from jax.experimental import pallas as pl
from jax.experimental.pallas import tpu as pltpu

# Module-level diffusion hyperparameters referenced by the PyTorch module.
TIMESTEPS = 100
BETA_START = 1e-4
BETA_END = 0.02

_HAS_STATEFUL_NORMAL = hasattr(pltpu, "stateful_normal")


# --------------------------------------------------------------------------
# Pallas kernels
# --------------------------------------------------------------------------
def _fwd_process_rng_kernel(seed_ref, sac_ref, somac_ref, x_ref, xt_ref, noise_ref):
    """x_t = sqrt_ac * x + sqrt_omac * N(0,1); noise generated on-chip.

    seed_ref : SMEM (1,)  int32
    sac_ref / somac_ref : VMEM (B, 1) f32   (per-batch scalars, lane-broadcast)
    x_ref / xt_ref / noise_ref : VMEM (B, C*H*W) f32 (lane-dense)
    """
    pltpu.prng_seed(seed_ref[0])
    noise = pltpu.stateful_normal(x_ref.shape, jnp.float32).astype(x_ref.dtype)
    noise_ref[...] = noise
    xt_ref[...] = sac_ref[...] * x_ref[...] + somac_ref[...] * noise


def _fwd_process_kernel(sac_ref, somac_ref, x_ref, noise_ref, xt_ref):
    """Fallback variant: noise supplied by the wrapper (jax.random.normal)."""
    xt_ref[...] = sac_ref[...] * x_ref[...] + somac_ref[...] * noise_ref[...]


# --------------------------------------------------------------------------
# Schedules + forward wrapper
# --------------------------------------------------------------------------
def make_schedules(timesteps=TIMESTEPS, beta_start=BETA_START, beta_end=BETA_END):
    betas = jnp.linspace(beta_start, beta_end, timesteps, dtype=jnp.float32)
    alphas = 1.0 - betas
    alphas_cumprod = jnp.cumprod(alphas, axis=0)
    return betas, alphas, alphas_cumprod


def forward_process_layer(alphas_cumprod, x, t, rng_seed, use_inkernel_rng):
    """Pallas-backed equivalent of ForwardProcessLayer.forward(x, t).

    Returns (x_t, noise), both shaped like x.
    """
    B, C, H, W = x.shape
    N = C * H * W
    x2d = x.reshape(B, N)                              # metadata-only reshape

    ac_t = alphas_cumprod[t]                           # (B,) gather: O(B) work
    sqrt_ac = jnp.sqrt(ac_t).reshape(B, 1).astype(x.dtype)
    sqrt_omac = jnp.sqrt(1.0 - ac_t).reshape(B, 1).astype(x.dtype)

    vmem = pl.BlockSpec(memory_space=pltpu.MemorySpace.VMEM)
    smem = pl.BlockSpec(memory_space=pltpu.MemorySpace.SMEM)

    if use_inkernel_rng:
        seed = jnp.asarray(rng_seed, dtype=jnp.int32).reshape((1,))
        xt2d, noise2d = pl.pallas_call(
            _fwd_process_rng_kernel,
            out_shape=(
                jax.ShapeDtypeStruct((B, N), x.dtype),
                jax.ShapeDtypeStruct((B, N), x.dtype),
            ),
            in_specs=[smem, vmem, vmem, vmem],
            out_specs=(vmem, vmem),
        )(seed, sqrt_ac, sqrt_omac, x2d)
    else:
        noise2d = jax.random.normal(
            jax.random.PRNGKey(rng_seed), (B, N), dtype=x.dtype
        )
        xt2d = pl.pallas_call(
            _fwd_process_kernel,
            out_shape=jax.ShapeDtypeStruct((B, N), x.dtype),
            in_specs=[vmem, vmem, vmem, vmem],
            out_specs=vmem,
        )(sqrt_ac, sqrt_omac, x2d, noise2d)

    return xt2d.reshape(B, C, H, W), noise2d.reshape(B, C, H, W)


# --------------------------------------------------------------------------
if __name__ == "__main__":
    B, C, H, W = 2, 4, 16, 16

    key = jax.random.PRNGKey(0)
    k_x, k_t = jax.random.split(key)
    x = jax.random.normal(k_x, (B, C, H, W), dtype=jnp.float32)
    t = jax.random.randint(k_t, (B,), 0, TIMESTEPS, dtype=jnp.int32)

    _, _, alphas_cumprod = make_schedules()

    def run(use_inkernel_rng):
        f = jax.jit(
            lambda ac, xx, tt, s: forward_process_layer(ac, xx, tt, s, use_inkernel_rng)
        )
        out = f(alphas_cumprod, x, t, 0)
        return jax.block_until_ready(out)

    if _HAS_STATEFUL_NORMAL:
        try:
            x_t, noise = run(True)
        except Exception:
            # TODO(synk): in-kernel hardware-PRNG path unavailable in this JAX
            # build; fall back to wrapper-generated noise.
            x_t, noise = run(False)
    else:
        x_t, noise = run(False)

    assert x_t.shape == (B, C, H, W) and noise.shape == (B, C, H, W)
    assert x_t.dtype == jnp.float32 and noise.dtype == jnp.float32

    # The affine combination must match the schedule exactly, whatever the
    # source of the (returned) noise.
    ac_t = alphas_cumprod[t]
    ref = (
        jnp.sqrt(ac_t)[:, None, None, None] * x
        + jnp.sqrt(1.0 - ac_t)[:, None, None, None] * noise
    )
    assert jnp.allclose(x_t, ref, rtol=1e-5, atol=1e-5), "mismatch vs JAX reference"

    # Loose sanity check that the returned noise is standard-normal-ish.
    m = float(jnp.mean(noise))
    s = float(jnp.std(noise))
    assert abs(m) < 0.25 and 0.75 < s < 1.25, f"noise stats off: mean={m}, std={s}"

    print("KERNEL_OK")
</pallas_src>

<mosaic_0001>
module attributes {stable_mosaic.version = 11 : i64} {
  func.func @_fwd_process_rng_kernel(%arg0: memref<1xi32, #tpu.memory_space<smem>>, %arg1: memref<2x1xf32, #tpu.memory_space<vmem>>, %arg2: memref<2x1xf32, #tpu.memory_space<vmem>>, %arg3: memref<2x1024xf32, #tpu.memory_space<vmem>>, %arg4: memref<2x1024xf32, #tpu.memory_space<vmem>>, %arg5: memref<2x1024xf32, #tpu.memory_space<vmem>>) attributes {dimension_semantics = [], scalar_prefetch = 0 : i64, scratch_operands = 0 : i64, tpu.core_type = #tpu.core_type<tc>} {
    %c0 = arith.constant 0 : index
    %0 = memref.load %arg0[%c0] : memref<1xi32, #tpu.memory_space<smem>>
    "tpu.prng_set_seed_32"(%0) : (i32) -> ()
    %c0_i32 = arith.constant 0 : i32
    %c0_i32_0 = arith.constant 0 : i32
    %cst = arith.constant -0.99999994 : f32
    %cst_1 = arith.constant 1.000000e+00 : f32
    %1 = vector.broadcast %cst : f32 to vector<1x1xf32>
    %2 = vector.broadcast %cst_1 : f32 to vector<1x1xf32>
    %3 = "tpu.prng_random_bits"() : () -> vector<2x1024xi32>
    %c9_i32 = arith.constant 9 : i32
    %4 = vector.broadcast %c9_i32 : i32 to vector<2x1024xi32>
    %5 = arith.shrui %3, %4 : vector<2x1024xi32>
    %c1065353216_i32 = arith.constant 1065353216 : i32
    %6 = vector.broadcast %c1065353216_i32 : i32 to vector<2x1024xi32>
    %7 = arith.ori %5, %6 : vector<2x1024xi32>
    %8 = tpu.bitcast %7 : vector<2x1024xi32> -> vector<2x1024xf32>
    %cst_2 = arith.constant 1.000000e+00 : f32
    %9 = vector.broadcast %cst_2 : f32 to vector<2x1024xf32>
    %10 = arith.subf %8, %9 : vector<2x1024xf32>
    %11 = arith.subf %2, %1 : vector<1x1xf32>
    %12 = vector.broadcast %11 : vector<1x1xf32> to vector<2x1024xf32>
    %13 = arith.mulf %10, %12 : vector<2x1024xf32>
    %14 = vector.broadcast %1 : vector<1x1xf32> to vector<2x1024xf32>
    %15 = arith.addf %13, %14 : vector<2x1024xf32>
    %16 = vector.broadcast %1 : vector<1x1xf32> to vector<2x1024xf32>
    %17 = arith.maximumf %16, %15 : vector<2x1024xf32>
    %cst_3 = arith.constant 0.000000e+00 : f32
    %18 = vector.broadcast %cst_3 : f32 to vector<2x1024xf32>
    %19 = arith.subf %18, %17 : vector<2x1024xf32>
    %20 = arith.mulf %17, %19 : vector<2x1024xf32>
    %21 = math.log1p %20 : vector<2x1024xf32>
    %cst_4 = arith.constant 0.000000e+00 : f32
    %22 = vector.broadcast %cst_4 : f32 to vector<2x1024xf32>
    %23 = arith.subf %22, %21 : vector<2x1024xf32>
    %cst_5 = arith.constant 5.000000e+00 : f32
    %24 = vector.broadcast %cst_5 : f32 to vector<2x1024xf32>
    %25 = arith.cmpf olt, %23, %24 : vector<2x1024xf32>
    %cst_6 = arith.constant 2.500000e+00 : f32
    %26 = vector.broadcast %cst_6 : f32 to vector<2x1024xf32>
    %27 = arith.subf %23, %26 : vector<2x1024xf32>
    %28 = math.sqrt %23 : vector<2x1024xf32>
    %cst_7 = arith.constant 3.000000e+00 : f32
    %29 = vector.broadcast %cst_7 : f32 to vector<2x1024xf32>
    %30 = arith.subf %28, %29 : vector<2x1024xf32>
    %31 = arith.select %25, %27, %30 : vector<2x1024xi1>, vector<2x1024xf32>
    %cst_8 = arith.constant 2.81022636E-8 : f32
    %cst_9 = arith.constant -2.00214257E-4 : f32
    %32 = vector.broadcast %cst_8 : f32 to vector<2x1024xf32>
    %33 = vector.broadcast %cst_9 : f32 to vector<2x1024xf32>
    %34 = arith.select %25, %32, %33 : vector<2x1024xi1>, vector<2x1024xf32>
    %cst_10 = arith.constant 3.43273939E-7 : f32
    %cst_11 = arith.constant 1.00950558E-4 : f32
    %35 = vector.broadcast %cst_10 : f32 to vector<2x1024xf32>
    %36 = vector.broadcast %cst_11 : f32 to vector<2x1024xf32>
    %37 = arith.select %25, %35, %36 : vector<2x1024xi1>, vector<2x1024xf32>
    %38 = arith.mulf %34, %31 : vector<2x1024xf32>
    %39 = arith.addf %37, %38 : vector<2x1024xf32>
    %cst_12 = arith.constant -3.5233877E-6 : f32
    %cst_13 = arith.constant 0.00134934322 : f32
    %40 = vector.broadcast %cst_12 : f32 to vector<2x1024xf32>
    %41 = vector.broadcast %cst_13 : f32 to vector<2x1024xf32>
    %42 = arith.select %25, %40, %41 : vector<2x1024xi1>, vector<2x1024xf32>
    %43 = arith.mulf %39, %31 : vector<2x1024xf32>
    %44 = arith.addf %42, %43 : vector<2x1024xf32>
    %cst_14 = arith.constant -4.39150654E-6 : f32
    %cst_15 = arith.constant -0.00367342844 : f32
    %45 = vector.broadcast %cst_14 : f32 to vector<2x1024xf32>
    %46 = vector.broadcast %cst_15 : f32 to vector<2x1024xf32>
    %47 = arith.select %25, %45, %46 : vector<2x1024xi1>, vector<2x1024xf32>
    %48 = arith.mulf %44, %31 : vector<2x1024xf32>
    %49 = arith.addf %47, %48 : vector<2x1024xf32>
    %cst_16 = arith.constant 2.1858087E-4 : f32
    %cst_17 = arith.constant 0.00573950773 : f32
    %50 = vector.broadcast %cst_16 : f32 to vector<2x1024xf32>
    %51 = vector.broadcast %cst_17 : f32 to vector<2x1024xf32>
    %52 = arith.select %25, %50, %51 : vector<2x1024xi1>, vector<2x1024xf32>
    %53 = arith.mulf %49, %31 : vector<2x1024xf32>
    %54 = arith.addf %52, %53 : vector<2x1024xf32>
    %cst_18 = arith.constant -0.00125372503 : f32
    %cst_19 = arith.constant -0.0076224613 : f32
    %55 = vector.broadcast %cst_18 : f32 to vector<2x1024xf32>
    %56 = vector.broadcast %cst_19 : f32 to vector<2x1024xf32>
    %57 = arith.select %25, %55, %56 : vector<2x1024xi1>, vector<2x1024xf32>
    %58 = arith.mulf %54, %31 : vector<2x1024xf32>
    %59 = arith.addf %57, %58 : vector<2x1024xf32>
    %cst_20 = arith.constant -0.00417768164 : f32
    %cst_21 = arith.constant 0.00943887047 : f32
    %60 = vector.broadcast %cst_20 : f32 to vector<2x1024xf32>
    %61 = vector.broadcast %cst_21 : f32 to vector<2x1024xf32>
    %62 = arith.select %25, %60, %61 : vector<2x1024xi1>, vector<2x1024xf32>
    %63 = arith.mulf %59, %31 : vector<2x1024xf32>
    %64 = arith.addf %62, %63 : vector<2x1024xf32>
    %cst_22 = arith.constant 0.246640727 : f32
    %cst_23 = arith.constant 1.00167406 : f32
    %65 = vector.broadcast %cst_22 : f32 to vector<2x1024xf32>
    %66 = vector.broadcast %cst_23 : f32 to vector<2x1024xf32>
    %67 = arith.select %25, %65, %66 : vector<2x1024xi1>, vector<2x1024xf32>
    %68 = arith.mulf %64, %31 : vector<2x1024xf32>
    %69 = arith.addf %67, %68 : vector<2x1024xf32>
    %cst_24 = arith.constant 1.50140941 : f32
    %cst_25 = arith.constant 2.83297682 : f32
    %70 = vector.broadcast %cst_24 : f32 to vector<2x1024xf32>
    %71 = vector.broadcast %cst_25 : f32 to vector<2x1024xf32>
    %72 = arith.select %25, %70, %71 : vector<2x1024xi1>, vector<2x1024xf32>
    %73 = arith.mulf %69, %31 : vector<2x1024xf32>
    %74 = arith.addf %72, %73 : vector<2x1024xf32>
    %75 = math.absf %17 : vector<2x1024xf32>
    %cst_26 = arith.constant 1.000000e+00 : f32
    %76 = vector.broadcast %cst_26 : f32 to vector<2x1024xf32>
    %77 = arith.cmpf oeq, %75, %76 : vector<2x1024xf32>
    %cst_27 = arith.constant 0x7F800000 : f32
    %78 = vector.broadcast %cst_27 : f32 to vector<2x1024xf32>
    %79 = arith.mulf %78, %17 : vector<2x1024xf32>
    %80 = arith.mulf %74, %17 : vector<2x1024xf32>
    %81 = arith.select %77, %79, %80 : vector<2x1024xi1>, vector<2x1024xf32>
    %cst_28 = arith.constant 1.41421354 : f32
    %82 = vector.broadcast %cst_28 : f32 to vector<2x1024xf32>
    %83 = arith.mulf %82, %81 : vector<2x1024xf32>
    %c0_29 = arith.constant 0 : index
    %c0_30 = arith.constant 0 : index
    %84 = vector.load %arg5[%c0_29, %c0_30] : memref<2x1024xf32, #tpu.memory_space<vmem>>, vector<2x1024xf32>
    tpu.vector_store %arg5[%c0_29, %c0_30], %83 {strides = array<i32>} : memref<2x1024xf32, #tpu.memory_space<vmem>>, vector<2x1024xf32>,
    %c0_31 = arith.constant 0 : index
    %c0_32 = arith.constant 0 : index
    %85 = vector.load %arg1[%c0_31, %c0_32] : memref<2x1xf32, #tpu.memory_space<vmem>>, vector<2x1xf32>
    %c0_33 = arith.constant 0 : index
    %c0_34 = arith.constant 0 : index
    %86 = vector.load %arg3[%c0_33, %c0_34] : memref<2x1024xf32, #tpu.memory_space<vmem>>, vector<2x1024xf32>
    %87 = vector.broadcast %85 : vector<2x1xf32> to vector<2x1024xf32>
    %88 = arith.mulf %87, %86 : vector<2x1024xf32>
    %c0_35 = arith.constant 0 : index
    %c0_36 = arith.constant 0 : index
    %89 = vector.load %arg2[%c0_35, %c0_36] : memref<2x1xf32, #tpu.memory_space<vmem>>, vector<2x1xf32>
    %90 = vector.broadcast %89 : vector<2x1xf32> to vector<2x1024xf32>
    %91 = arith.mulf %90, %83 : vector<2x1024xf32>
    %92 = arith.addf %88, %91 : vector<2x1024xf32>
    %c0_37 = arith.constant 0 : index
    %c0_38 = arith.constant 0 : index
    %93 = vector.load %arg4[%c0_37, %c0_38] : memref<2x1024xf32, #tpu.memory_space<vmem>>, vector<2x1024xf32>
    tpu.vector_store %arg4[%c0_37, %c0_38], %92 {strides = array<i32>} : memref<2x1024xf32, #tpu.memory_space<vmem>>, vector<2x1024xf32>,
    return
  }
}

module attributes {stable_mosaic.version = 11 : i64} {
  func.func @_fwd_process_kernel(%arg0: memref<2x1xf32, #tpu.memory_space<vmem>>, %arg1: memref<2x1xf32, #tpu.memory_space<vmem>>, %arg2: memref<2x1024xf32, #tpu.memory_space<vmem>>, %arg3: memref<2x1024xf32, #tpu.memory_space<vmem>>, %arg4: memref<2x1024xf32, #tpu.memory_space<vmem>>) attributes {dimension_semantics = [], scalar_prefetch = 0 : i64, scratch_operands = 0 : i64, tpu.core_type = #tpu.core_type<tc>} {
    %c0 = arith.constant 0 : index
    %c0_0 = arith.constant 0 : index
    %0 = vector.load %arg0[%c0, %c0_0] : memref<2x1xf32, #tpu.memory_space<vmem>>, vector<2x1xf32>
    %c0_1 = arith.constant 0 : index
    %c0_2 = arith.constant 0 : index
    %1 = vector.load %arg2[%c0_1, %c0_2] : memref<2x1024xf32, #tpu.memory_space<vmem>>, vector<2x1024xf32>
    %2 = vector.broadcast %0 : vector<2x1xf32> to vector<2x1024xf32>
    %3 = arith.mulf %2, %1 : vector<2x1024xf32>
    %c0_3 = arith.constant 0 : index
    %c0_4 = arith.constant 0 : index
    %4 = vector.load %arg1[%c0_3, %c0_4] : memref<2x1xf32, #tpu.memory_space<vmem>>, vector<2x1xf32>
    %c0_5 = arith.constant 0 : index
    %c0_6 = arith.constant 0 : index
    %5 = vector.load %arg3[%c0_5, %c0_6] : memref<2x1024xf32, #tpu.memory_space<vmem>>, vector<2x1024xf32>
    %6 = vector.broadcast %4 : vector<2x1xf32> to vector<2x1024xf32>
    %7 = arith.mulf %6, %5 : vector<2x1024xf32>
    %8 = arith.addf %3, %7 : vector<2x1024xf32>
    %c0_7 = arith.constant 0 : index
    %c0_8 = arith.constant 0 : index
    %9 = vector.load %arg4[%c0_7, %c0_8] : memref<2x1024xf32, #tpu.memory_space<vmem>>, vector<2x1024xf32>
    tpu.vector_store %arg4[%c0_7, %c0_8], %8 {strides = array<i32>} : memref<2x1024xf32, #tpu.memory_space<vmem>>, vector<2x1024xf32>,
    return
  }
}

</mosaic_0001>

<llo_original>
// kernel: _lambda_.1
$region0: #{_lambda_.1}
  #allocation0 [shape = 'u32[]', space=smem, size = 0x4, offset = 0x4, fixed_abs, tag = 'smem constant byte address 0x4 - core index']
  #allocation1 [shape = 'u32[144,128]{1,0:T(1,128)}', space=vmem, size = 0x12000, scoped, tag = 'internal scratch']
  #allocation2 [shape = 's32[1]{0:T(128)S(6)}', space=smem, size = 0x200, scoped, tag = 'scoped memory for _lambda_.1']
  %s0 = inlined_call_operand.<no memory space> [shape: s32[1], index: 0, kind: input, shape index: {}]
  %s1 = inlined_call_operand.vmem [shape: f32[2,1], index: 1, kind: input, shape index: {}]
  %s2 = inlined_call_operand.vmem [shape: f32[2,1], index: 2, kind: input, shape index: {}]
  %s3 = inlined_call_operand.vmem [shape: f32[2,1024], index: 3, kind: input, shape index: {}]
  %s4 = inlined_call_operand.vmem [shape: f32[2,1024], index: 4, kind: output, shape index: {0}]
  %s5 = inlined_call_operand.vmem [shape: f32[2,1024], index: 5, kind: output, shape index: {1}]
  %6 = xla_tuple %s4, %s5
  %s7 = sld [smem:[#allocation0]]
  $region34: #{_lambda_.1} parent=0
    _
  %s9 = ssub.s32 1, %s7
  %s10 = scalar_select 0, %s9, %s7
  %11 = sst [smem:[#allocation2]] %s0
  // Predicated region
  $region2: #{_lambda_.1} parent=0 // pred_check
    _
  $region3: #{_lambda_.1} parent=0 // pred_check_branch
    %13 = sbr.rel (0) target = $region5
  $region4: #{_lambda_.1} parent=0 // pred_region
    _
  $region5: #{_lambda_.1} parent=0 // pred_fallthru
    _
  // Predicated region
  $region6: #{_lambda_.1} parent=0 // pred_check
    _
  $region7: #{_lambda_.1} parent=0 // pred_check_branch
    %15 = sbr.rel (0) target = $region9
  $region8: #{_lambda_.1} parent=0 // pred_region
    _
  $region9: #{_lambda_.1} parent=0 // pred_fallthru
    _
  // Predicated region
  $region10: #{_lambda_.1} parent=0 // pred_check
    _
  $region11: #{_lambda_.1} parent=0 // pred_check_branch
    %17 = sbr.rel (0) target = $region13
  $region12: #{_lambda_.1} parent=0 // pred_region
    _
  $region13: #{_lambda_.1} parent=0 // pred_fallthru
    _
  // Predicated region
  $region14: #{_lambda_.1} parent=0 // pred_check
    _
  $region15: #{_lambda_.1} parent=0 // pred_check_branch
    %19 = sbr.rel (0) target = $region17
  $region16: #{_lambda_.1} parent=0 // pred_region
    _
  $region17: #{_lambda_.1} parent=0 // pred_fallthru
    _
  %s20 = sld [smem:[#allocation2]]
  %v21 = vlaneseq
  %v22 = vstv %s20
  %v23 = vxor.u32 %v22, %v22
  %v24 = vxor.u32 %v23, 466688986
  %v25 = vadd.s32 %v21, %v22
  %v26 = vadd.s32 %v25, %v25
  %v27 = vshll.u32 %v25, 13
  %v28 = vshrl.u32 %v25, 19
  %v29 = vor.u32 %v27, %v28
  %v30 = vxor.u32 %v26, %v29
  %v31 = vadd.s32 %v26, %v30
  %v32 = vshll.u32 %v30, 15
  %v33 = vshrl.u32 %v30, 17
  %v34 = vor.u32 %v32, %v33
  %v35 = vxor.u32 %v31, %v34
  %v36 = vadd.s32 %v31, %v35
  %v37 = vshll.u32 %v35, 26
  %v38 = vshrl.u32 %v35, 6
  %v39 = vor.u32 %v37, %v38
  %v40 = vxor.u32 %v36, %v39
  %v41 = vadd.s32 %v36, %v40
  %v42 = vshll.u32 %v40, 6
  %v43 = vshrl.u32 %v40, 26
  %v44 = vor.u32 %v42, %v43
  %v45 = vxor.u32 %v41, %v44
  %v46 = vadd.s32 %v41, %v22
  %v47 = vadd.s32 %v45, %v24
  %v48 = vadd.s32 %v47, 1
  %v49 = vadd.s32 %v46, %v48
  %v50 = vshll.u32 %v48, 17
  %v51 = vshrl.u32 %v48, 15
  %v52 = vor.u32 %v50, %v51
  %v53 = vxor.u32 %v49, %v52
  %v54 = vadd.s32 %v49, %v53
  %v55 = vshll.u32 %v53, 29
  %v56 = vshrl.u32 %v53, 3
  %v57 = vor.u32 %v55, %v56
  %v58 = vxor.u32 %v54, %v57
  %v59 = vadd.s32 %v54, %v58
  %v60 = vshll.u32 %v58, 16
  %v61 = vshrl.u32 %v58, 16
  %v62 = vor.u32 %v60, %v61
  %v63 = vxor.u32 %v59, %v62
  %v64 = vadd.s32 %v59, %v63
  %v65 = vshll.u32 %v63, 24
  %v66 = vshrl.u32 %v63, 8
  %v67 = vor.u32 %v65, %v66
  %v68 = vxor.u32 %v64, %v67
  %v69 = vadd.s32 %v64, %v24
  %v70 = vadd.s32 %v68, %v22
  %v71 = vadd.s32 %v70, 2
  %v72 = vadd.s32 %v69, %v71
  %v73 = vshll.u32 %v71, 13
  %v74 = vshrl.u32 %v71, 19
  %v75 = vor.u32 %v73, %v74
  %v76 = vxor.u32 %v72, %v75
  %v77 = vadd.s32 %v72, %v76
  %v78 = vshll.u32 %v76, 15
  %v79 = vshrl.u32 %v76, 17
  %v80 = vor.u32 %v78, %v79
  %v81 = vxor.u32 %v77, %v80
  %v82 = vadd.s32 %v77, %v81
  %v83 = vshll.u32 %v81, 26
  %v84 = vshrl.u32 %v81, 6
  %v85 = vor.u32 %v83, %v84
  %v86 = vxor.u32 %v82, %v85
  %v87 = vadd.s32 %v82, %v86
  %v88 = vshll.u32 %v86, 6
  %v89 = vshrl.u32 %v86, 26
  %v90 = vor.u32 %v88, %v89
  %v91 = vxor.u32 %v87, %v90
  %v92 = vadd.s32 %v87, %v22
  %v93 = vadd.s32 %v91, %v22
  %v94 = vadd.s32 %v93, 3
  %v95 = vadd.s32 %v92, %v94
  %v96 = vshll.u32 %v94, 17
  %v97 = vshrl.u32 %v94, 15
  %v98 = vor.u32 %v96, %v97
  %v99 = vxor.u32 %v95, %v98
  %v100 = vadd.s32 %v95, %v99
  %v101 = vshll.u32 %v99, 29
  %v102 = vshrl.u32 %v99, 3
  %v103 = vor.u32 %v101, %v102
  %v104 = vxor.u32 %v100, %v103
  %v105 = vadd.s32 %v100, %v104
  %v106 = vshll.u32 %v104, 16
  %v107 = vshrl.u32 %v104, 16
  %v108 = vor.u32 %v106, %v107
  %v109 = vxor.u32 %v105, %v108
  %v110 = vadd.s32 %v105, %v109
  %v111 = vshll.u32 %v109, 24
  %v112 = vshrl.u32 %v109, 8
  %v113 = vor.u32 %v111, %v112
  %v114 = vxor.u32 %v110, %v113
  %v115 = vadd.s32 %v110, %v22
  %v116 = vadd.s32 %v114, %v24
  %v117 = vadd.s32 %v116, 4
  %v118 = vadd.s32 %v115, %v117
  %v119 = vshll.u32 %v117, 13
  %v120 = vshrl.u32 %v117, 19
  %v121 = vor.u32 %v119, %v120
  %v122 = vxor.u32 %v118, %v121
  %v123 = vadd.s32 %v118, %v122
  %v124 = vshll.u32 %v122, 15
  %v125 = vshrl.u32 %v122, 17
  %v126 = vor.u32 %v124, %v125
  %v127 = vxor.u32 %v123, %v126
  %v128 = vadd.s32 %v123, %v127
  %v129 = vshll.u32 %v127, 26
  %v130 = vshrl.u32 %v127, 6
  %v131 = vor.u32 %v129, %v130
  %v132 = vxor.u32 %v128, %v131
  %v133 = vadd.s32 %v128, %v132
  %v134 = vshll.u32 %v132, 6
  %v135 = vshrl.u32 %v132, 26
  %v136 = vor.u32 %v134, %v135
  %v137 = vxor.u32 %v133, %v136
  %v138 = vadd.s32 %v133, %v24
  %v139 = vadd.s32 %v137, %v22
  %v140 = vadd.s32 %v139, 5
  %v141 = vxor.u32 %v138, %v140
  %142 = set.rngseed %v141
  %v143 = vrng
  %v144 = vrng
  %v145 = vrng
  %v146 = vrng
  %v147 = vrng
  %v148 = vrng
  %v149 = vrng
  %v150 = vrng
  %v151 = vshrl.u32 %v143, 9
  %v152 = vshrl.u32 %v144, 9
  %v153 = vshrl.u32 %v145, 9
  %v154 = vshrl.u32 %v146, 9
  %v155 = vshrl.u32 %v147, 9
  %v156 = vshrl.u32 %v148, 9
  %v157 = vshrl.u32 %v149, 9
  %v158 = vshrl.u32 %v150, 9
  %v159 = vor.u32 %v151, 1065353216
  %v160 = vor.u32 %v152, 1065353216
  %v161 = vor.u32 %v153, 1065353216
  %v162 = vor.u32 %v154, 1065353216
  %v163 = vor.u32 %v155, 1065353216
  %v164 = vor.u32 %v156, 1065353216
  %v165 = vor.u32 %v157, 1065353216
  %v166 = vor.u32 %v158, 1065353216
  %v175 = vsub.f32 %v159, 1.0
  %v176 = vsub.f32 %v160, 1.0
  %v177 = vsub.f32 %v161, 1.0
  %v178 = vsub.f32 %v162, 1.0
  %v179 = vsub.f32 %v163, 1.0
  %v180 = vsub.f32 %v164, 1.0
  %v181 = vsub.f32 %v165, 1.0
  %v182 = vsub.f32 %v166, 1.0
  %v183 = vmul.f32 %v175, 2.0
  %v184 = vmul.f32 %v176, 2.0
  %v185 = vmul.f32 %v177, 2.0
  %v186 = vmul.f32 %v178, 2.0
  %v187 = vmul.f32 %v179, 2.0
  %v188 = vmul.f32 %v180, 2.0
  %v189 = vmul.f32 %v181, 2.0
  %v190 = vmul.f32 %v182, 2.0
  %v191 = vadd.f32 %v183, -0.99999994
  %v192 = vadd.f32 %v184, -0.99999994
  %v193 = vadd.f32 %v185, -0.99999994
  %v194 = vadd.f32 %v186, -0.99999994
  %v195 = vadd.f32 %v187, -0.99999994
  %v196 = vadd.f32 %v188, -0.99999994
  %v197 = vadd.f32 %v189, -0.99999994
  %v198 = vadd.f32 %v190, -0.99999994
  %v199 = vmax.f32 %v191, -0.99999994
  %v200 = vmax.f32 %v192, -0.99999994
  %v201 = vmax.f32 %v193, -0.99999994
  %v202 = vmax.f32 %v194, -0.99999994
  %v203 = vmax.f32 %v195, -0.99999994
  %v204 = vmax.f32 %v196, -0.99999994
  %v205 = vmax.f32 %v197, -0.99999994
  %v206 = vmax.f32 %v198, -0.99999994
  %v207 = vsub.f32 0.0, %v199
  %v208 = vsub.f32 0.0, %v200
  %v209 = vsub.f32 0.0, %v201
  %v210 = vsub.f32 0.0, %v202
  %v211 = vsub.f32 0.0, %v203
  %v212 = vsub.f32 0.0, %v204
  %v213 = vsub.f32 0.0, %v205
  %v214 = vsub.f32 0.0, %v206
  %v215 = vmul.f32 %v199, %v207
  %v216 = vmul.f32 %v200, %v208
  %v217 = vmul.f32 %v201, %v209
  %v218 = vmul.f32 %v202, %v210
  %v219 = vmul.f32 %v203, %v211
  %v220 = vmul.f32 %v204, %v212
  %v221 = vmul.f32 %v205, %v213
  %v222 = vmul.f32 %v206, %v214
  %v223 = vadd.f32 %v215, 1.0
  %v224 = vlog2.pop %v223
  %v225 = vmul.f32 %v224, 0.6931472
  %v226 = vmul.f32 -0.5, %v215
  %v227 = vadd.f32 %v226, 1.0
  %v228 = vmul.f32 %v227, %v215
  %v229 = vand.u32 2147483647, %v215
  %vm230 = vcmp.lt.f32.partialorder %v229, 0.0004427343
  %v231 = vsel %vm230, %v228, %v225
  %v232 = vadd.f32 %v216, 1.0
  %v233 = vlog2.pop %v232
  %v234 = vmul.f32 %v233, 0.6931472
  %v235 = vmul.f32 -0.5, %v216
  %v236 = vadd.f32 %v235, 1.0
  %v237 = vmul.f32 %v236, %v216
  %v238 = vand.u32 2147483647, %v216
  %vm239 = vcmp.lt.f32.partialorder %v238, 0.0004427343
  %v240 = vsel %vm239, %v237, %v234
  %v241 = vadd.f32 %v217, 1.0
  %v242 = vlog2.pop %v241
  %v243 = vmul.f32 %v242, 0.6931472
  %v244 = vmul.f32 -0.5, %v217
  %v245 = vadd.f32 %v244, 1.0
  %v246 = vmul.f32 %v245, %v217
  %v247 = vand.u32 2147483647, %v217
  %vm248 = vcmp.lt.f32.partialorder %v247, 0.0004427343
  %v249 = vsel %vm248, %v246, %v243
  %v250 = vadd.f32 %v218, 1.0
  %v251 = vlog2.pop %v250
  %v252 = vmul.f32 %v251, 0.6931472
  %v253 = vmul.f32 -0.5, %v218
  %v254 = vadd.f32 %v253, 1.0
  %v255 = vmul.f32 %v254, %v218
  %v256 = vand.u32 2147483647, %v218
  %vm257 = vcmp.lt.f32.partialorder %v256, 0.0004427343
  %v258 = vsel %vm257, %v255, %v252
  %v259 = vadd.f32 %v219, 1.0
  %v260 = vlog2.pop %v259
  %v261 = vmul.f32 %v260, 0.6931472
  %v262 = vmul.f32 -0.5, %v219
  %v263 = vadd.f32 %v262, 1.0
  %v264 = vmul.f32 %v263, %v219
  %v265 = vand.u32 2147483647, %v219
  %vm266 = vcmp.lt.f32.partialorder %v265, 0.0004427343
  %v267 = vsel %vm266, %v264, %v261
  %v268 = vadd.f32 %v220, 1.0
  %v269 = vlog2.pop %v268
  %v270 = vmul.f32 %v269, 0.6931472
  %v271 = vmul.f32 -0.5, %v220
  %v272 = vadd.f32 %v271, 1.0
  %v273 = vmul.f32 %v272, %v220
  %v274 = vand.u32 2147483647, %v220
  %vm275 = vcmp.lt.f32.partialorder %v274, 0.0004427343
  %v276 = vsel %vm275, %v273, %v270
  %v277 = vadd.f32 %v221, 1.0
  %v278 = vlog2.pop %v277
  %v279 = vmul.f32 %v278, 0.6931472
  %v280 = vmul.f32 -0.5, %v221
  %v281 = vadd.f32 %v280, 1.0
  %v282 = vmul.f32 %v281, %v221
  %v283 = vand.u32 2147483647, %v221
  %vm284 = vcmp.lt.f32.partialorder %v283, 0.0004427343
  %v285 = vsel %vm284, %v282, %v279
  %v286 = vadd.f32 %v222, 1.0
  %v287 = vlog2.pop %v286
  %v288 = vmul.f32 %v287, 0.6931472
  %v289 = vmul.f32 -0.5, %v222
  %v290 = vadd.f32 %v289, 1.0
  %v291 = vmul.f32 %v290, %v222
  %v292 = vand.u32 2147483647, %v222
  %vm293 = vcmp.lt.f32.partialorder %v292, 0.0004427343
  %v294 = vsel %vm293, %v291, %v288
  %v295 = vsub.f32 0.0, %v231
  %v296 = vsub.f32 0.0, %v240
  %v297 = vsub.f32 0.0, %v249
  %v298 = vsub.f32 0.0, %v258
  %v299 = vsub.f32 0.0, %v267
  %v300 = vsub.f32 0.0, %v276
  %v301 = vsub.f32 0.0, %v285
  %v302 = vsub.f32 0.0, %v294
  %vm303 = vcmp.lt.f32.partialorder %v295, 5.0
  %vm304 = vcmp.lt.f32.partialorder %v296, 5.0
  %vm305 = vcmp.lt.f32.partialorder %v297, 5.0
  %vm306 = vcmp.lt.f32.partialorder %v298, 5.0
  %vm307 = vcmp.lt.f32.partialorder %v299, 5.0
  %vm308 = vcmp.lt.f32.partialorder %v300, 5.0
  %vm309 = vcmp.lt.f32.partialorder %v301, 5.0
  %vm310 = vcmp.lt.f32.partialorder %v302, 5.0
  %v311 = vsub.f32 %v295, 2.5
  %v312 = vsub.f32 %v296, 2.5
  %v313 = vsub.f32 %v297, 2.5
  %v314 = vsub.f32 %v298, 2.5
  %v315 = vsub.f32 %v299, 2.5
  %v316 = vsub.f32 %v300, 2.5
  %v317 = vsub.f32 %v301, 2.5
  %v318 = vsub.f32 %v302, 2.5
  %v319 = vrsqrt.pop %v295
  %v320 = vmul.f32 %v295, %v319
  %vm321 = vcmp.eq.f32.partialorder %v295, inf
  %v322 = vsel %vm321, %v295, %v320
  %vm323 = vcmp.eq.f32.partialorder %v295, 0.0
  %v324 = vand.u32 %v295, 2147483648
  %v325 = vsel %vm323, %v324, %v322
  %v326 = vrsqrt.pop %v296
  %v327 = vmul.f32 %v296, %v326
  %vm328 = vcmp.eq.f32.partialorder %v296, inf
  %v329 = vsel %vm328, %v296, %v327
  %vm330 = vcmp.eq.f32.partialorder %v296, 0.0
  %v331 = vand.u32 %v296, 2147483648
  %v332 = vsel %vm330, %v331, %v329
  %v333 = vrsqrt.pop %v297
  %v334 = vmul.f32 %v297, %v333
  %vm335 = vcmp.eq.f32.partialorder %v297, inf
  %v336 = vsel %vm335, %v297, %v334
  %vm337 = vcmp.eq.f32.partialorder %v297, 0.0
  %v338 = vand.u32 %v297, 2147483648
  %v339 = vsel %vm337, %v338, %v336
  %v340 = vrsqrt.pop %v298
  %v341 = vmul.f32 %v298, %v340
  %vm342 = vcmp.eq.f32.partialorder %v298, inf
  %v343 = vsel %vm342, %v298, %v341
  %vm344 = vcmp.eq.f32.partialorder %v298, 0.0
  %v345 = vand.u32 %v298, 2147483648
  %v346 = vsel %vm344, %v345, %v343
  %v347 = vrsqrt.pop %v299
  %v348 = vmul.f32 %v299, %v347
  %vm349 = vcmp.eq.f32.partialorder %v299, inf
  %v350 = vsel %vm349, %v299, %v348
  %vm351 = vcmp.eq.f32.partialorder %v299, 0.0
  %v352 = vand.u32 %v299, 2147483648
  %v353 = vsel %vm351, %v352, %v350
  %v354 = vrsqrt.pop %v300
  %v355 = vmul.f32 %v300, %v354
  %vm356 = vcmp.eq.f32.partialorder %v300, inf
  %v357 = vsel %vm356, %v300, %v355
  %vm358 = vcmp.eq.f32.partialorder %v300, 0.0
  %v359 = vand.u32 %v300, 2147483648
  %v360 = vsel %vm358, %v359, %v357
  %v361 = vrsqrt.pop %v301
  %v362 = vmul.f32 %v301, %v361
  %vm363 = vcmp.eq.f32.partialorder %v301, inf
  %v364 = vsel %vm363, %v301, %v362
  %vm365 = vcmp.eq.f32.partialorder %v301, 0.0
  %v366 = vand.u32 %v301, 2147483648
  %v367 = vsel %vm365, %v366, %v364
  %v368 = vrsqrt.pop %v302
  %v369 = vmul.f32 %v302, %v368
  %vm370 = vcmp.eq.f32.partialorder %v302, inf
  %v371 = vsel %vm370, %v302, %v369
  %vm372 = vcmp.eq.f32.partialorder %v302, 0.0
  %v373 = vand.u32 %v302, 2147483648
  %v374 = vsel %vm372, %v373, %v371
  %v375 = vsub.f32 %v325, 3.0
  %v376 = vsub.f32 %v332, 3.0
  %v377 = vsub.f32 %v339, 3.0
  %v378 = vsub.f32 %v346, 3.0
  %v379 = vsub.f32 %v353, 3.0
  %v380 = vsub.f32 %v360, 3.0
  %v381 = vsub.f32 %v367, 3.0
  %v382 = vsub.f32 %v374, 3.0
  %v383 = vsel %vm303, %v311, %v375
  %v384 = vsel %vm304, %v312, %v376
  %v385 = vsel %vm305, %v313, %v377
  %v386 = vsel %vm306, %v314, %v378
  %v387 = vsel %vm307, %v315, %v379
  %v388 = vsel %vm308, %v316, %v380
  %v389 = vsel %vm309, %v317, %v381
  %v390 = vsel %vm310, %v318, %v382
  %v391 = vsel %vm303, 2.8102264e-08, -0.00020021426
  %v392 = vsel %vm304, 2.8102264e-08, -0.00020021426
  %v393 = vsel %vm305, 2.8102264e-08, -0.00020021426
  %v394 = vsel %vm306, 2.8102264e-08, -0.00020021426
  %v395 = vsel %vm307, 2.8102264e-08, -0.00020021426
  %v396 = vsel %vm308, 2.8102264e-08, -0.00020021426
  %v397 = vsel %vm309, 2.8102264e-08, -0.00020021426
  %v398 = vsel %vm310, 2.8102264e-08, -0.00020021426
  %v399 = vsel %vm303, 3.4327394e-07, 0.00010095056
  %v400 = vsel %vm304, 3.4327394e-07, 0.00010095056
  %v401 = vsel %vm305, 3.4327394e-07, 0.00010095056
  %v402 = vsel %vm306, 3.4327394e-07, 0.00010095056
  %v403 = vsel %vm307, 3.4327394e-07, 0.00010095056
  %v404 = vsel %vm308, 3.4327394e-07, 0.00010095056
  %v405 = vsel %vm309, 3.4327394e-07, 0.00010095056
  %v406 = vsel %vm310, 3.4327394e-07, 0.00010095056
  %v407 = vmul.f32 %v391, %v383
  %v408 = vmul.f32 %v392, %v384
  %v409 = vmul.f32 %v393, %v385
  %v410 = vmul.f32 %v394, %v386
  %v411 = vmul.f32 %v395, %v387
  %v412 = vmul.f32 %v396, %v388
  %v413 = vmul.f32 %v397, %v389
  %v414 = vmul.f32 %v398, %v390
  %v415 = vadd.f32 %v399, %v407
  %v416 = vadd.f32 %v400, %v408
  %v417 = vadd.f32 %v401, %v409
  %v418 = vadd.f32 %v402, %v410
  %v419 = vadd.f32 %v403, %v411
  %v420 = vadd.f32 %v404, %v412
  %v421 = vadd.f32 %v405, %v413
  %v422 = vadd.f32 %v406, %v414
  %v423 = vsel %vm303, -3.5233877e-06, 0.0013493432
  %v424 = vsel %vm304, -3.5233877e-06, 0.0013493432
  %v425 = vsel %vm305, -3.5233877e-06, 0.0013493432
  %v426 = vsel %vm306, -3.5233877e-06, 0.0013493432
  %v427 = vsel %vm307, -3.5233877e-06, 0.0013493432
  %v428 = vsel %vm308, -3.5233877e-06, 0.0013493432
  %v429 = vsel %vm309, -3.5233877e-06, 0.0013493432
  %v430 = vsel %vm310, -3.5233877e-06, 0.0013493432
  %v431 = vmul.f32 %v415, %v383
  %v432 = vmul.f32 %v416, %v384
  %v433 = vmul.f32 %v417, %v385
  %v434 = vmul.f32 %v418, %v386
  %v435 = vmul.f32 %v419, %v387
  %v436 = vmul.f32 %v420, %v388
  %v437 = vmul.f32 %v421, %v389
  %v438 = vmul.f32 %v422, %v390
  %v439 = vadd.f32 %v423, %v431
  %v440 = vadd.f32 %v424, %v432
  %v441 = vadd.f32 %v425, %v433
  %v442 = vadd.f32 %v426, %v434
  %v443 = vadd.f32 %v427, %v435
  %v444 = vadd.f32 %v428, %v436
  %v445 = vadd.f32 %v429, %v437
  %v446 = vadd.f32 %v430, %v438
  %v447 = vsel %vm303, -4.3915065e-06, -0.0036734284
  %v448 = vsel %vm304, -4.3915065e-06, -0.0036734284
  %v449 = vsel %vm305, -4.3915065e-06, -0.0036734284
  %v450 = vsel %vm306, -4.3915065e-06, -0.0036734284
  %v451 = vsel %vm307, -4.3915065e-06, -0.0036734284
  %v452 = vsel %vm308, -4.3915065e-06, -0.0036734284
  %v453 = vsel %vm309, -4.3915065e-06, -0.0036734284
  %v454 = vsel %vm310, -4.3915065e-06, -0.0036734284
  %v455 = vmul.f32 %v439, %v383
  %v456 = vmul.f32 %v440, %v384
  %v457 = vmul.f32 %v441, %v385
  %v458 = vmul.f32 %v442, %v386
  %v459 = vmul.f32 %v443, %v387
  %v460 = vmul.f32 %v444, %v388
  %v461 = vmul.f32 %v445, %v389
  %v462 = vmul.f32 %v446, %v390
  %v463 = vadd.f32 %v447, %v455
  %v464 = vadd.f32 %v448, %v456
  %v465 = vadd.f32 %v449, %v457
  %v466 = vadd.f32 %v450, %v458
  %v467 = vadd.f32 %v451, %v459
  %v468 = vadd.f32 %v452, %v460
  %v469 = vadd.f32 %v453, %v461
  %v470 = vadd.f32 %v454, %v462
  %v471 = vsel %vm303, 0.00021858087, 0.0057395077
  %v472 = vsel %vm304, 0.00021858087, 0.0057395077
  %v473 = vsel %vm305, 0.00021858087, 0.0057395077
  %v474 = vsel %vm306, 0.00021858087, 0.0057395077
  %v475 = vsel %vm307, 0.00021858087, 0.0057395077
  %v476 = vsel %vm308, 0.00021858087, 0.0057395077
  %v477 = vsel %vm309, 0.00021858087, 0.0057395077
  %v478 = vsel %vm310, 0.00021858087, 0.0057395077
  %v479 = vmul.f32 %v463, %v383
  %v480 = vmul.f32 %v464, %v384
  %v481 = vmul.f32 %v465, %v385
  %v482 = vmul.f32 %v466, %v386
  %v483 = vmul.f32 %v467, %v387
  %v484 = vmul.f32 %v468, %v388
  %v485 = vmul.f32 %v469, %v389
  %v486 = vmul.f32 %v470, %v390
  %v487 = vadd.f32 %v471, %v479
  %v488 = vadd.f32 %v472, %v480
  %v489 = vadd.f32 %v473, %v481
  %v490 = vadd.f32 %v474, %v482
  %v491 = vadd.f32 %v475, %v483
  %v492 = vadd.f32 %v476, %v484
  %v493 = vadd.f32 %v477, %v485
  %v494 = vadd.f32 %v478, %v486
  %v495 = vsel %vm303, -0.001253725, -0.0076224613
  %v496 = vsel %vm304, -0.001253725, -0.0076224613
  %v497 = vsel %vm305, -0.001253725, -0.0076224613
  %v498 = vsel %vm306, -0.001253725, -0.0076224613
  %v499 = vsel %vm307, -0.001253725, -0.0076224613
  %v500 = vsel %vm308, -0.001253725, -0.0076224613
  %v501 = vsel %vm309, -0.001253725, -0.0076224613
  %v502 = vsel %vm310, -0.001253725, -0.0076224613
  %v503 = vmul.f32 %v487, %v383
  %v504 = vmul.f32 %v488, %v384
  %v505 = vmul.f32 %v489, %v385
  %v506 = vmul.f32 %v490, %v386
  %v507 = vmul.f32 %v491, %v387
  %v508 = vmul.f32 %v492, %v388
  %v509 = vmul.f32 %v493, %v389
  %v510 = vmul.f32 %v494, %v390
  %v511 = vadd.f32 %v495, %v503
  %v512 = vadd.f32 %v496, %v504
  %v513 = vadd.f32 %v497, %v505
  %v514 = vadd.f32 %v498, %v506
  %v515 = vadd.f32 %v499, %v507
  %v516 = vadd.f32 %v500, %v508
  %v517 = vadd.f32 %v501, %v509
  %v518 = vadd.f32 %v502, %v510
  %v519 = vsel %vm303, -0.0041776816, 0.0094388705
  %v520 = vsel %vm304, -0.0041776816, 0.0094388705
  %v521 = vsel %vm305, -0.0041776816, 0.0094388705
  %v522 = vsel %vm306, -0.0041776816, 0.0094388705
  %v523 = vsel %vm307, -0.0041776816, 0.0094388705
  %v524 = vsel %vm308, -0.0041776816, 0.0094388705
  %v525 = vsel %vm309, -0.0041776816, 0.0094388705
  %v526 = vsel %vm310, -0.0041776816, 0.0094388705
  %v527 = vmul.f32 %v511, %v383
  %v528 = vmul.f32 %v512, %v384
  %v529 = vmul.f32 %v513, %v385
  %v530 = vmul.f32 %v514, %v386
  %v531 = vmul.f32 %v515, %v387
  %v532 = vmul.f32 %v516, %v388
  %v533 = vmul.f32 %v517, %v389
  %v534 = vmul.f32 %v518, %v390
  %v535 = vadd.f32 %v519, %v527
  %v536 = vadd.f32 %v520, %v528
  %v537 = vadd.f32 %v521, %v529
  %v538 = vadd.f32 %v522, %v530
  %v539 = vadd.f32 %v523, %v531
  %v540 = vadd.f32 %v524, %v532
  %v541 = vadd.f32 %v525, %v533
  %v542 = vadd.f32 %v526, %v534
  %v543 = vsel %vm303, 0.24664073, 1.001674
  %v544 = vsel %vm304, 0.24664073, 1.001674
  %v545 = vsel %vm305, 0.24664073, 1.001674
  %v546 = vsel %vm306, 0.24664073, 1.001674
  %v547 = vsel %vm307, 0.24664073, 1.001674
  %v548 = vsel %vm308, 0.24664073, 1.001674
  %v549 = vsel %vm309, 0.24664073, 1.001674
  %v550 = vsel %vm310, 0.24664073, 1.001674
  %v551 = vmul.f32 %v535, %v383
  %v552 = vmul.f32 %v536, %v384
  %v553 = vmul.f32 %v537, %v385
  %v554 = vmul.f32 %v538, %v386
  %v555 = vmul.f32 %v539, %v387
  %v556 = vmul.f32 %v540, %v388
  %v557 = vmul.f32 %v541, %v389
  %v558 = vmul.f32 %v542, %v390
  %v559 = vadd.f32 %v543, %v551
  %v560 = vadd.f32 %v544, %v552
  %v561 = vadd.f32 %v545, %v553
  %v562 = vadd.f32 %v546, %v554
  %v563 = vadd.f32 %v547, %v555
  %v564 = vadd.f32 %v548, %v556
  %v565 = vadd.f32 %v549, %v557
  %v566 = vadd.f32 %v550, %v558
  %v567 = vsel %vm303, 1.5014094, 2.8329768
  %v568 = vsel %vm304, 1.5014094, 2.8329768
  %v569 = vsel %vm305, 1.5014094, 2.8329768
  %v570 = vsel %vm306, 1.5014094, 2.8329768
  %v571 = vsel %vm307, 1.5014094, 2.8329768
  %v572 = vsel %vm308, 1.5014094, 2.8329768
  %v573 = vsel %vm309, 1.5014094, 2.8329768
  %v574 = vsel %vm310, 1.5014094, 2.8329768
  %v575 = vmul.f32 %v559, %v383
  %v576 = vmul.f32 %v560, %v384
  %v577 = vmul.f32 %v561, %v385
  %v578 = vmul.f32 %v562, %v386
  %v579 = vmul.f32 %v563, %v387
  %v580 = vmul.f32 %v564, %v388
  %v581 = vmul.f32 %v565, %v389
  %v582 = vmul.f32 %v566, %v390
  %v583 = vadd.f32 %v567, %v575
  %v584 = vadd.f32 %v568, %v576
  %v585 = vadd.f32 %v569, %v577
  %v586 = vadd.f32 %v570, %v578
  %v587 = vadd.f32 %v571, %v579
  %v588 = vadd.f32 %v572, %v580
  %v589 = vadd.f32 %v573, %v581
  %v590 = vadd.f32 %v574, %v582
  %v591 = vand.u32 2147483647, %v199
  %v592 = vand.u32 2147483647, %v200
  %v593 = vand.u32 2147483647, %v201
  %v594 = vand.u32 2147483647, %v202
  %v595 = vand.u32 2147483647, %v203
  %v596 = vand.u32 2147483647, %v204
  %v597 = vand.u32 2147483647, %v205
  %v598 = vand.u32 2147483647, %v206
  %vm599 = vcmp.eq.f32.partialorder %v591, 1.0
  %vm600 = vcmp.eq.f32.partialorder %v592, 1.0
  %vm601 = vcmp.eq.f32.partialorder %v593, 1.0
  %vm602 = vcmp.eq.f32.partialorder %v594, 1.0
  %vm603 = vcmp.eq.f32.partialorder %v595, 1.0
  %vm604 = vcmp.eq.f32.partialorder %v596, 1.0
  %vm605 = vcmp.eq.f32.partialorder %v597, 1.0
  %vm606 = vcmp.eq.f32.partialorder %v598, 1.0
  %v607 = vmul.f32 %v199, inf
  %v608 = vmul.f32 %v200, inf
  %v609 = vmul.f32 %v201, inf
  %v610 = vmul.f32 %v202, inf
  %v611 = vmul.f32 %v203, inf
  %v612 = vmul.f32 %v204, inf
  %v613 = vmul.f32 %v205, inf
  %v614 = vmul.f32 %v206, inf
  %v615 = vmul.f32 %v583, %v199
  %v616 = vmul.f32 %v584, %v200
  %v617 = vmul.f32 %v585, %v201
  %v618 = vmul.f32 %v586, %v202
  %v619 = vmul.f32 %v587, %v203
  %v620 = vmul.f32 %v588, %v204
  %v621 = vmul.f32 %v589, %v205
  %v622 = vmul.f32 %v590, %v206
  %v623 = vsel %vm599, %v607, %v615
  %v624 = vsel %vm600, %v608, %v616
  %v625 = vsel %vm601, %v609, %v617
  %v626 = vsel %vm602, %v610, %v618
  %v627 = vsel %vm603, %v611, %v619
  %v628 = vsel %vm604, %v612, %v620
  %v629 = vsel %vm605, %v613, %v621
  %v630 = vsel %vm606, %v614, %v622
  %v631 = vmul.f32 %v623, 1.4142135
  %v632 = vmul.f32 %v624, 1.4142135
  %v633 = vmul.f32 %v625, 1.4142135
  %v634 = vmul.f32 %v626, 1.4142135
  %v635 = vmul.f32 %v627, 1.4142135
  %v636 = vmul.f32 %v628, 1.4142135
  %v637 = vmul.f32 %v629, 1.4142135
  %v638 = vmul.f32 %v630, 1.4142135
  %v647 = vcombine.low %v631, %v632
  %v648 = vcombine.low %v633, %v634
  %v650 = vunpack.c.l.s4 1983009808
  %v651 = vunpack.c.0.s8 %v650
  %v652 = vlaneseq
  %v653 = vshrl.u32 %v652, 7
  %v654 = vsub.s32 %v651, %v653
  %v655 = vrot.slane %v647, %v654
  %v657 = vunpack.c.l.s4 1983009808
  %v658 = vunpack.c.0.s8 %v657
  %v659 = vlaneseq
  %v660 = vshrl.u32 %v659, 7
  %v661 = vsub.s32 %v658, %v660
  %v662 = vrot.slane %v648, %v661
  %v663 = vcombine.low %v655, %v662
  %v664 = vcombine.low %v635, %v636
  %v665 = vcombine.low %v637, %v638
  %v667 = vunpack.c.l.s4 1983009808
  %v668 = vunpack.c.0.s8 %v667
  %v669 = vlaneseq
  %v670 = vshrl.u32 %v669, 7
  %v671 = vsub.s32 %v668, %v670
  %v672 = vrot.slane %v664, %v671
  %v674 = vunpack.c.l.s4 1983009808
  %v675 = vunpack.c.0.s8 %v674
  %v676 = vlaneseq
  %v677 = vshrl.u32 %v676, 7
  %v678 = vsub.s32 %v675, %v677
  %v679 = vrot.slane %v665, %v678
  %v680 = vcombine.low %v672, %v679
  %683 = vst [vmem:[%s5] sm:$0xff] %v663
  %684 = vst [vmem:[%s5 + $0x8] sm:$0xff] %v680
  %v685 = vld [vmem:[%s1] sm:$0x3]
  %v686 = vld [vmem:[%s3] sm:$0xff]
  %v687 = vld [vmem:[%s3 + $0x8] sm:$0xff]
  %689 = vset.pattern.permute.xlu0 0
  %690 = vperm.xlu0 %689, %v685
  %v691 = vpop.permute.xlu0 %690
  %v695 = vcombine.high %v686, %v686
  %v697 = vunpack.c.l.s4 1983009808
  %v698 = vunpack.c.0.s8 %v697
  %v699 = vlaneseq
  %v700 = vshrl.u32 %v699, 7
  %v701 = vsub.s32 %v698, %v700
  %v702 = vrot.slane %v686, %v701
  %v704 = vunpack.c.l.s4 1983009808
  %v705 = vunpack.c.0.s8 %v704
  %v706 = vlaneseq
  %v707 = vshrl.u32 %v706, 7
  %v708 = vsub.s32 %v705, %v707
  %v709 = vrot.slane %v695, %v708
  %v710 = vcombine.high %v702, %v702
  %v711 = vcombine.high %v709, %v709
  %v712 = vcombine.high %v687, %v687
  %v714 = vunpack.c.l.s4 1983009808
  %v715 = vunpack.c.0.s8 %v714
  %v716 = vlaneseq
  %v717 = vshrl.u32 %v716, 7
  %v718 = vsub.s32 %v715, %v717
  %v719 = vrot.slane %v687, %v718
  %v721 = vunpack.c.l.s4 1983009808
  %v722 = vunpack.c.0.s8 %v721
  %v723 = vlaneseq
  %v724 = vshrl.u32 %v723, 7
  %v725 = vsub.s32 %v722, %v724
  %v726 = vrot.slane %v712, %v725
  %v727 = vcombine.high %v719, %v719
  %v728 = vcombine.high %v726, %v726
  %v737 = vmul.f32 %v691, %v702
  %v738 = vmul.f32 %v691, %v710
  %v739 = vmul.f32 %v691, %v709
  %v740 = vmul.f32 %v691, %v711
  %v741 = vmul.f32 %v691, %v719
  %v742 = vmul.f32 %v691, %v727
  %v743 = vmul.f32 %v691, %v726
  %v744 = vmul.f32 %v691, %v728
  %v745 = vld [vmem:[%s2] sm:$0x3]
  %747 = vset.pattern.permute.xlu0 0
  %748 = vperm.xlu0 %747, %v745
  %v749 = vpop.permute.xlu0 %748
  %v751 = vmul.f32 %v749, %v631
  %v752 = vmul.f32 %v749, %v632
  %v753 = vmul.f32 %v749, %v633
  %v754 = vmul.f32 %v749, %v634
  %v755 = vmul.f32 %v749, %v635
  %v756 = vmul.f32 %v749, %v636
  %v757 = vmul.f32 %v749, %v637
  %v758 = vmul.f32 %v749, %v638
  %v759 = vadd.f32 %v737, %v751
  %v760 = vadd.f32 %v738, %v752
  %v761 = vadd.f32 %v739, %v753
  %v762 = vadd.f32 %v740, %v754
  %v763 = vadd.f32 %v741, %v755
  %v764 = vadd.f32 %v742, %v756
  %v765 = vadd.f32 %v743, %v757
  %v766 = vadd.f32 %v744, %v758
  %v775 = vcombine.low %v759, %v760
  %v776 = vcombine.low %v761, %v762
  %v778 = vunpack.c.l.s4 1983009808
  %v779 = vunpack.c.0.s8 %v778
  %v780 = vlaneseq
  %v781 = vshrl.u32 %v780, 7
  %v782 = vsub.s32 %v779, %v781
  %v783 = vrot.slane %v775, %v782
  %v785 = vunpack.c.l.s4 1983009808
  %v786 = vunpack.c.0.s8 %v785
  %v787 = vlaneseq
  %v788 = vshrl.u32 %v787, 7
  %v789 = vsub.s32 %v786, %v788
  %v790 = vrot.slane %v776, %v789
  %v791 = vcombine.low %v783, %v790
  %v792 = vcombine.low %v763, %v764
  %v793 = vcombine.low %v765, %v766
  %v795 = vunpack.c.l.s4 1983009808
  %v796 = vunpack.c.0.s8 %v795
  %v797 = vlaneseq
  %v798 = vshrl.u32 %v797, 7
  %v799 = vsub.s32 %v796, %v798
  %v800 = vrot.slane %v792, %v799
  %v802 = vunpack.c.l.s4 1983009808
  %v803 = vunpack.c.0.s8 %v802
  %v804 = vlaneseq
  %v805 = vshrl.u32 %v804, 7
  %v806 = vsub.s32 %v803, %v805
  %v807 = vrot.slane %v793, %v806
  %v808 = vcombine.low %v800, %v807
  %811 = vst [vmem:[%s4] sm:$0xff] %v791
  %812 = vst [vmem:[%s4 + $0x8] sm:$0xff] %v808
  // Predicated region
  $region18: #{_lambda_.1} parent=0 // pred_check
    _
  $region19: #{_lambda_.1} parent=0 // pred_check_branch
    %814 = sbr.rel (0) target = $region21
  $region20: #{_lambda_.1} parent=0 // pred_region
    _
  $region21: #{_lambda_.1} parent=0 // pred_fallthru
    _
  // Predicated region
  $region22: #{_lambda_.1} parent=0 // pred_check
    _
  $region23: #{_lambda_.1} parent=0 // pred_check_branch
    %816 = sbr.rel (0) target = $region25
  $region24: #{_lambda_.1} parent=0 // pred_region
    _
  $region25: #{_lambda_.1} parent=0 // pred_fallthru
    _
  // Predicated region
  $region26: #{_lambda_.1} parent=0 // pred_check
    _
  $region27: #{_lambda_.1} parent=0 // pred_check_branch
    %818 = sbr.rel (0) target = $region29
  $region28: #{_lambda_.1} parent=0 // pred_region
    _
  $region29: #{_lambda_.1} parent=0 // pred_fallthru
    _
  // Predicated region
  $region30: #{_lambda_.1} parent=0 // pred_check
    _
  $region31: #{_lambda_.1} parent=0 // pred_check_branch
    %820 = sbr.rel (0) target = $region33
  $region32: #{_lambda_.1} parent=0 // pred_region
    _
  $region33: #{_lambda_.1} parent=0 // pred_fallthru
    _

// kernel: _lambda_.1
$region0: #{_lambda_.1}
  #allocation0 [shape = 'u32[]', space=smem, size = 0x4, offset = 0x4, fixed_abs, tag = 'smem constant byte address 0x4 - core index']
  #allocation1 [shape = 'u32[144,128]{1,0:T(1,128)}', space=vmem, size = 0x12000, scoped, tag = 'internal scratch']
  %s0 = inlined_call_operand.vmem [shape: f32[2,1], index: 0, kind: input, shape index: {}]
  %s1 = inlined_call_operand.vmem [shape: f32[2,1], index: 1, kind: input, shape index: {}]
  %s2 = inlined_call_operand.vmem [shape: f32[2,1024], index: 2, kind: input, shape index: {}]
  %s3 = inlined_call_operand.vmem [shape: f32[2,1024], index: 3, kind: input, shape index: {}]
  %s4 = inlined_call_operand.vmem [shape: f32[2,1024], index: 4, kind: output, shape index: {}]
  %s5 = sld [smem:[#allocation0]]
  $region26: #{_lambda_.1} parent=0
    _
  %s7 = ssub.s32 1, %s5
  %s8 = scalar_select 0, %s7, %s5
  // Predicated region
  $region2: #{_lambda_.1} parent=0 // pred_check
    _
  $region3: #{_lambda_.1} parent=0 // pred_check_branch
    %10 = sbr.rel (0) target = $region5
  $region4: #{_lambda_.1} parent=0 // pred_region
    _
  $region5: #{_lambda_.1} parent=0 // pred_fallthru
    _
  // Predicated region
  $region6: #{_lambda_.1} parent=0 // pred_check
    _
  $region7: #{_lambda_.1} parent=0 // pred_check_branch
    %12 = sbr.rel (0) target = $region9
  $region8: #{_lambda_.1} parent=0 // pred_region
    _
  $region9: #{_lambda_.1} parent=0 // pred_fallthru
    _
  // Predicated region
  $region10: #{_lambda_.1} parent=0 // pred_check
    _
  $region11: #{_lambda_.1} parent=0 // pred_check_branch
    %14 = sbr.rel (0) target = $region13
  $region12: #{_lambda_.1} parent=0 // pred_region
    _
  $region13: #{_lambda_.1} parent=0 // pred_fallthru
    _
  // Predicated region
  $region14: #{_lambda_.1} parent=0 // pred_check
    _
  $region15: #{_lambda_.1} parent=0 // pred_check_branch
    %16 = sbr.rel (0) target = $region17
  $region16: #{_lambda_.1} parent=0 // pred_region
    _
  $region17: #{_lambda_.1} parent=0 // pred_fallthru
    _
  %v17 = vld [vmem:[%s0] sm:$0x3]
  %v18 = vld [vmem:[%s2] sm:$0xff]
  %v19 = vld [vmem:[%s2 + $0x8] sm:$0xff]
  %21 = vset.pattern.permute.xlu0 0
  %22 = vperm.xlu0 %21, %v17
  %v23 = vpop.permute.xlu0 %22
  %v27 = vcombine.high %v18, %v18
  %v29 = vunpack.c.l.s4 1983009808
  %v30 = vunpack.c.0.s8 %v29
  %v31 = vlaneseq
  %v32 = vshrl.u32 %v31, 7
  %v33 = vsub.s32 %v30, %v32
  %v34 = vrot.slane %v18, %v33
  %v36 = vunpack.c.l.s4 1983009808
  %v37 = vunpack.c.0.s8 %v36
  %v38 = vlaneseq
  %v39 = vshrl.u32 %v38, 7
  %v40 = vsub.s32 %v37, %v39
  %v41 = vrot.slane %v27, %v40
  %v42 = vcombine.high %v34, %v34
  %v43 = vcombine.high %v41, %v41
  %v44 = vcombine.high %v19, %v19
  %v46 = vunpack.c.l.s4 1983009808
  %v47 = vunpack.c.0.s8 %v46
  %v48 = vlaneseq
  %v49 = vshrl.u32 %v48, 7
  %v50 = vsub.s32 %v47, %v49
  %v51 = vrot.slane %v19, %v50
  %v53 = vunpack.c.l.s4 1983009808
  %v54 = vunpack.c.0.s8 %v53
  %v55 = vlaneseq
  %v56 = vshrl.u32 %v55, 7
  %v57 = vsub.s32 %v54, %v56
  %v58 = vrot.slane %v44, %v57
  %v59 = vcombine.high %v51, %v51
  %v60 = vcombine.high %v58, %v58
  %v69 = vmul.f32 %v23, %v34
  %v70 = vmul.f32 %v23, %v42
  %v71 = vmul.f32 %v23, %v41
  %v72 = vmul.f32 %v23, %v43
  %v73 = vmul.f32 %v23, %v51
  %v74 = vmul.f32 %v23, %v59
  %v75 = vmul.f32 %v23, %v58
  %v76 = vmul.f32 %v23, %v60
  %v77 = vld [vmem:[%s1] sm:$0x3]
  %v78 = vld [vmem:[%s3] sm:$0xff]
  %v79 = vld [vmem:[%s3 + $0x8] sm:$0xff]
  %81 = vset.pattern.permute.xlu0 0
  %82 = vperm.xlu0 %81, %v77
  %v83 = vpop.permute.xlu0 %82
  %v87 = vcombine.high %v78, %v78
  %v89 = vunpack.c.l.s4 1983009808
  %v90 = vunpack.c.0.s8 %v89
  %v91 = vlaneseq
  %v92 = vshrl.u32 %v91, 7
  %v93 = vsub.s32 %v90, %v92
  %v94 = vrot.slane %v78, %v93
  %v96 = vunpack.c.l.s4 1983009808
  %v97 = vunpack.c.0.s8 %v96
  %v98 = vlaneseq
  %v99 = vshrl.u32 %v98, 7
  %v100 = vsub.s32 %v97, %v99
  %v101 = vrot.slane %v87, %v100
  %v102 = vcombine.high %v94, %v94
  %v103 = vcombine.high %v101, %v101
  %v104 = vcombine.high %v79, %v79
  %v106 = vunpack.c.l.s4 1983009808
  %v107 = vunpack.c.0.s8 %v106
  %v108 = vlaneseq
  %v109 = vshrl.u32 %v108, 7
  %v110 = vsub.s32 %v107, %v109
  %v111 = vrot.slane %v79, %v110
  %v113 = vunpack.c.l.s4 1983009808
  %v114 = vunpack.c.0.s8 %v113
  %v115 = vlaneseq
  %v116 = vshrl.u32 %v115, 7
  %v117 = vsub.s32 %v114, %v116
  %v118 = vrot.slane %v104, %v117
  %v119 = vcombine.high %v111, %v111
  %v120 = vcombine.high %v118, %v118
  %v129 = vmul.f32 %v83, %v94
  %v130 = vmul.f32 %v83, %v102
  %v131 = vmul.f32 %v83, %v101
  %v132 = vmul.f32 %v83, %v103
  %v133 = vmul.f32 %v83, %v111
  %v134 = vmul.f32 %v83, %v119
  %v135 = vmul.f32 %v83, %v118
  %v136 = vmul.f32 %v83, %v120
  %v137 = vadd.f32 %v69, %v129
  %v138 = vadd.f32 %v70, %v130
  %v139 = vadd.f32 %v71, %v131
  %v140 = vadd.f32 %v72, %v132
  %v141 = vadd.f32 %v73, %v133
  %v142 = vadd.f32 %v74, %v134
  %v143 = vadd.f32 %v75, %v135
  %v144 = vadd.f32 %v76, %v136
  %v153 = vcombine.low %v137, %v138
  %v154 = vcombine.low %v139, %v140
  %v156 = vunpack.c.l.s4 1983009808
  %v157 = vunpack.c.0.s8 %v156
  %v158 = vlaneseq
  %v159 = vshrl.u32 %v158, 7
  %v160 = vsub.s32 %v157, %v159
  %v161 = vrot.slane %v153, %v160
  %v163 = vunpack.c.l.s4 1983009808
  %v164 = vunpack.c.0.s8 %v163
  %v165 = vlaneseq
  %v166 = vshrl.u32 %v165, 7
  %v167 = vsub.s32 %v164, %v166
  %v168 = vrot.slane %v154, %v167
  %v169 = vcombine.low %v161, %v168
  %v170 = vcombine.low %v141, %v142
  %v171 = vcombine.low %v143, %v144
  %v173 = vunpack.c.l.s4 1983009808
  %v174 = vunpack.c.0.s8 %v173
  %v175 = vlaneseq
  %v176 = vshrl.u32 %v175, 7
  %v177 = vsub.s32 %v174, %v176
  %v178 = vrot.slane %v170, %v177
  %v180 = vunpack.c.l.s4 1983009808
  %v181 = vunpack.c.0.s8 %v180
  %v182 = vlaneseq
  %v183 = vshrl.u32 %v182, 7
  %v184 = vsub.s32 %v181, %v183
  %v185 = vrot.slane %v171, %v184
  %v186 = vcombine.low %v178, %v185
  %189 = vst [vmem:[%s4] sm:$0xff] %v169
  %190 = vst [vmem:[%s4 + $0x8] sm:$0xff] %v186
  // Predicated region
  $region18: #{_lambda_.1} parent=0 // pred_check
    _
  $region19: #{_lambda_.1} parent=0 // pred_check_branch
    %192 = sbr.rel (0) target = $region21
  $region20: #{_lambda_.1} parent=0 // pred_region
    _
  $region21: #{_lambda_.1} parent=0 // pred_fallthru
    _
  // Predicated region
  $region22: #{_lambda_.1} parent=0 // pred_check
    _
  $region23: #{_lambda_.1} parent=0 // pred_check_branch
    %194 = sbr.rel (0) target = $region25
  $region24: #{_lambda_.1} parent=0 // pred_region
    _
  $region25: #{_lambda_.1} parent=0 // pred_fallthru
    _

</llo_original>
